<compile_context>
chip_gen: v7x
topology: tpu7x:2x2x1
jax: 0.10.0
libtpu: 0.0.40
codegen_flags: <defaults>
</compile_context>

<pallas_src>
import functools

import numpy as np
import jax
import jax.numpy as jnp
from jax.experimental import pallas as pl
from jax.experimental.pallas import tpu as pltpu

C_IN = 3
KH = KW = 3

# The module's fixed weights (OIHW: out=1, in=3, 3x3, each row = [-1, 0, 1]).
_FIXED_EDGE_WEIGHT = np.broadcast_to(
    np.array([-1.0, 0.0, 1.0], dtype=np.float32), (1, C_IN, KH, KW)).copy()


def _round_up(a, m):
    return ((a + m - 1) // m) * m


def _shift(v, s, length):
    """shifted[:, p] = v[:, p + s]; wrap-around only reaches cropped lanes."""
    if s == 0:
        return v
    if length % 128 == 0:
        return pltpu.roll(v, length - s, axis=1)     # XLU lane rotation (free-ish)
    return jnp.roll(v, -s, axis=1)                   # defensive fallback (unused: wrapper pads)


def _edge_kernel(w_ref, b_ref, x_ref, o_ref, *, img_w, hw, c_in):
    """Specialized separable path for the fixed [[-1,0,1]]x3x3 weights.

    x_ref: VMEM (tb, C_IN*hw) native dtype;  o_ref: VMEM (tb, hw) f32.
    """
    del w_ref  # weights are baked into the structure of this path
    # Channel sum (cast to f32 in VMEM; input may be bf16/f32/int).
    csum = x_ref[:, 0:hw].astype(jnp.float32)
    for c in range(1, c_in):
        csum = csum + x_ref[:, c * hw:(c + 1) * hw].astype(jnp.float32)
    # Vertical 3-row sum: S[i, j] = csum[i, j] + csum[i+1, j] + csum[i+2, j].
    vsum = csum + _shift(csum, img_w, hw) + _shift(csum, 2 * img_w, hw)
    # Horizontal [-1, 0, 1] tap: out[i, j] = S[i, j+2] - S[i, j]  (+ bias).
    o_ref[:, :] = _shift(vsum, 2, hw) - vsum + b_ref[0]


def _generic_kernel(w_ref, b_ref, x_ref, o_ref, *, img_w, hw, c_in, kh, kw):
    """Generic 3x3 conv taps (fallback for weights != the fixed edge kernel)."""
    partials = []
    for c in range(c_in):
        slab = x_ref[:, c * hw:(c + 1) * hw].astype(jnp.float32)
        acc = None
        for ki in range(kh):
            for kj in range(kw):
                term = w_ref[c * kh * kw + ki * kw + kj] * _shift(
                    slab, ki * img_w + kj, hw)
                acc = term if acc is None else acc + term   # init with first tap
        partials.append(acc)
    out = partials[0] + b_ref[0]
    for p in partials[1:]:
        out = out + p
    o_ref[:, :] = out


def _is_fixed_edge_weight(weight):
    try:
        wv = np.asarray(jax.device_get(weight), dtype=np.float32)
    except Exception:
        return False   # traced / abstract weight -> take the generic path
    return wv.shape == _FIXED_EDGE_WEIGHT.shape and np.array_equal(
        wv, _FIXED_EDGE_WEIGHT)


def edge_detection(x, weight, bias, *,
                   max_batch_tile=256,
                   target_grid_steps=8,                  # v7x: >=3-4 steps per TC
                   vmem_budget_bytes=24 * 1024 * 1024,   # tile sizing, incl. temps
                   vmem_limit_bytes=48 * 1024 * 1024):   # safe on v7x (64 MiB VMEM)
    """x: (N, 3, H, W); weight: (1, 3, 3, 3) OIHW; bias: (1,). Returns (N, 1, H-2, W-2)."""
    n, c, h, w = x.shape
    assert c == C_IN and h >= KH and w >= KW
    ho, wo = h - KH + 1, w - KW + 1
    hw = h * w
    hw_pad = _round_up(hw, 128)      # guarantees the XLU (pltpu.roll) path

    # Free, contiguous reshape to a lane-dense trailing axis.  No dtype cast
    # here: the input is DMA'd in its native dtype and cast to f32 in-kernel.
    x_flat = x.reshape(n, C_IN, hw)
    if hw_pad != hw:
        # One extra pad pass only when H*W is not already a multiple of 128.
        x_flat = jnp.pad(x_flat, ((0, 0), (0, 0), (0, hw_pad - hw)))
    x_flat = x_flat.reshape(n, C_IN * hw_pad)

    w_flat = jnp.asarray(weight, jnp.float32).reshape(-1)
    b_flat = jnp.asarray(bias, jnp.float32).reshape(-1)

    # --- batch-tile sizing: double-buffered in/out tiles + in-kernel temps ---
    in_item = jnp.dtype(x.dtype).itemsize
    per_row_bytes = hw_pad * (2 * C_IN * in_item   # input tile, double-buffered
                              + 2 * 4              # output tile, double-buffered
                              + 4 * 4)             # csum/vsum/rolled/out temps (f32)
    tb = max(1, vmem_budget_bytes // per_row_bytes)
    tb = min(tb, max_batch_tile)
    # Keep >= target_grid_steps grid steps when N allows (megacore + pipelining).
    tb = min(tb, max(8, -(-n // target_grid_steps)))
    tb = max(8, (tb // 8) * 8)                     # sublane-aligned batch tiles
    n_pad = _round_up(n, tb)
    if n_pad != n:
        x_flat = jnp.pad(x_flat, ((0, n_pad - n), (0, 0)))
    # TODO(synk): spatially tile H (with a 2-row halo) for images whose padded
    # slab does not fit VMEM even at tb=8; not needed at these sizes.

    if _is_fixed_edge_weight(weight):
        kernel = functools.partial(_edge_kernel, img_w=w, hw=hw_pad, c_in=C_IN)
    else:
        kernel = functools.partial(_generic_kernel, img_w=w, hw=hw_pad,
                                   c_in=C_IN, kh=KH, kw=KW)

    out_full = pl.pallas_call(
        kernel,
        out_shape=jax.ShapeDtypeStruct((n_pad, hw_pad), jnp.float32),
        grid=(n_pad // tb,),
        in_specs=[
            pl.BlockSpec(memory_space=pltpu.MemorySpace.SMEM),   # weights (27,)
            pl.BlockSpec(memory_space=pltpu.MemorySpace.SMEM),   # bias (1,)
            # TODO(synk): add pipeline_mode=pl.Buffered(3) only if profiling
            # shows exposed input DMA on short grids.
            pl.BlockSpec((tb, C_IN * hw_pad), lambda i: (i, 0)),
        ],
        out_specs=pl.BlockSpec((tb, hw_pad), lambda i: (i, 0)),
        compiler_params=pltpu.CompilerParams(
            dimension_semantics=("parallel",),
            vmem_limit_bytes=vmem_limit_bytes,
        ),
    )(w_flat, b_flat, x_flat)

    # Crop to the valid window (module semantics require (N, 1, H-2, W-2));
    # garbage only exists at rows >= HO, columns >= WO, and the hw padding tail.
    return out_full[:n, :hw].reshape(n, 1, h, w)[:, :, :ho, :wo]


if __name__ == "__main__":
    # Deterministic parameters exactly as in the PyTorch module __init__.
    conv1_weight = jnp.asarray(_FIXED_EDGE_WEIGHT)        # (1, 3, 3, 3)
    conv1_bias = jnp.array([0.0], dtype=jnp.float32)      # (1,)

    key = jax.random.PRNGKey(0)
    x = jax.random.normal(key, (2, 3, 16, 16), dtype=jnp.float32)

    out = edge_detection(x, conv1_weight, conv1_bias)
    out = jax.block_until_ready(out)

    # Cross-check against XLA's conv (same NCHW / OIHW convention as PyTorch).
    ref = jax.lax.conv_general_dilated(
        x, conv1_weight, window_strides=(1, 1), padding="VALID",
        dimension_numbers=("NCHW", "OIHW", "NCHW")) + conv1_bias.reshape(1, 1, 1, 1)
    assert out.shape == (2, 1, 14, 14)
    assert jnp.allclose(out, ref, atol=1e-5, rtol=1e-5)

    # Also exercise the generic fallback path (non-matching weights).
    wkey, bkey = jax.random.split(jax.random.PRNGKey(1))
    w_rand = jax.random.normal(wkey, (1, 3, 3, 3), dtype=jnp.float32)
    b_rand = jax.random.normal(bkey, (1,), dtype=jnp.float32)
    out_g = jax.block_until_ready(edge_detection(x, w_rand, b_rand))
    ref_g = jax.lax.conv_general_dilated(
        x, w_rand, window_strides=(1, 1), padding="VALID",
        dimension_numbers=("NCHW", "OIHW", "NCHW")) + b_rand.reshape(1, 1, 1, 1)
    assert jnp.allclose(out_g, ref_g, atol=1e-4, rtol=1e-4)

    print("KERNEL_OK")
</pallas_src>

<mosaic_0001>
module attributes {stable_mosaic.version = 11 : i64} {
  func.func @_edge_kernel(%arg0: i32, %arg1: memref<27xf32, #tpu.memory_space<smem>>, %arg2: memref<1xf32, #tpu.memory_space<smem>>, %arg3: memref<8x768xf32, #tpu.memory_space<vmem>>, %arg4: memref<8x256xf32, #tpu.memory_space<vmem>>) attributes {dimension_semantics = [#tpu.dimension_semantics<parallel>], iteration_bounds = array<i64: 1>, scalar_prefetch = 0 : i64, scratch_operands = 0 : i64, tpu.core_type = #tpu.core_type<tc>, window_params = [{transform_indices = @transform_0, window_bounds = array<i64: 27>}, {transform_indices = @transform_1, window_bounds = array<i64: 1>}, {transform_indices = @transform_2, window_bounds = array<i64: 8, 768>}, {transform_indices = @transform_3, window_bounds = array<i64: 8, 256>}]} {
    %c0 = arith.constant 0 : index
    %c0_0 = arith.constant 0 : index
    %0 = vector.load %arg3[%c0, %c0_0] : memref<8x768xf32, #tpu.memory_space<vmem>>, vector<8x256xf32>
    %c0_1 = arith.constant 0 : index
    %c256 = arith.constant 256 : index
    %1 = vector.load %arg3[%c0_1, %c256] : memref<8x768xf32, #tpu.memory_space<vmem>>, vector<8x256xf32>
    %2 = arith.addf %0, %1 : vector<8x256xf32>
    %c0_2 = arith.constant 0 : index
    %c512 = arith.constant 512 : index
    %3 = vector.load %arg3[%c0_2, %c512] : memref<8x768xf32, #tpu.memory_space<vmem>>, vector<8x256xf32>
    %4 = arith.addf %2, %3 : vector<8x256xf32>
    %c240_i32 = arith.constant 240 : i32
    %5 = tpu.dynamic_rotate %4 by %c240_i32 dim 1 : vector<8x256xf32>, i32 -> vector<8x256xf32>
    %6 = arith.addf %4, %5 : vector<8x256xf32>
    %c224_i32 = arith.constant 224 : i32
    %7 = tpu.dynamic_rotate %4 by %c224_i32 dim 1 : vector<8x256xf32>, i32 -> vector<8x256xf32>
    %8 = arith.addf %6, %7 : vector<8x256xf32>
    %c254_i32 = arith.constant 254 : i32
    %9 = tpu.dynamic_rotate %8 by %c254_i32 dim 1 : vector<8x256xf32>, i32 -> vector<8x256xf32>
    %10 = arith.subf %9, %8 : vector<8x256xf32>
    %c0_3 = arith.constant 0 : index
    %11 = memref.load %arg2[%c0_3] : memref<1xf32, #tpu.memory_space<smem>>
    %12 = vector.broadcast %11 : f32 to vector<8x256xf32>
    %13 = arith.addf %10, %12 : vector<8x256xf32>
    %c0_4 = arith.constant 0 : index
    %c0_5 = arith.constant 0 : index
    %14 = vector.load %arg4[%c0_4, %c0_5] : memref<8x256xf32, #tpu.memory_space<vmem>>, vector<8x256xf32>
    tpu.vector_store %arg4[%c0_4, %c0_5], %13 {strides = array<i32>} : memref<8x256xf32, #tpu.memory_space<vmem>>, vector<8x256xf32>,
    return
  }
  func.func @transform_0(%arg0: i32) -> i32 {
    %c0_i32 = arith.constant 0 : i32
    %c0_i32_0 = arith.constant 0 : i32
    return %c0_i32 : i32
  }
  func.func @transform_1(%arg0: i32) -> i32 {
    %c0_i32 = arith.constant 0 : i32
    %c0_i32_0 = arith.constant 0 : i32
    return %c0_i32 : i32
  }
  func.func @transform_2(%arg0: i32) -> (i32, i32) {
    %c0_i32 = arith.constant 0 : i32
    %c0_i32_0 = arith.constant 0 : i32
    return %arg0, %c0_i32 : i32, i32
  }
  func.func @transform_3(%arg0: i32) -> (i32, i32) {
    %c0_i32 = arith.constant 0 : i32
    %c0_i32_0 = arith.constant 0 : i32
    return %arg0, %c0_i32 : i32, i32
  }
}

</mosaic_0001>

<llo_original>
// kernel: tpu_custom_call.1
$region0: #{tpu_custom_call.1}
  #allocation0 [shape = 'u32[]', space=smem, size = 0x4, offset = 0x4, fixed_abs, tag = 'smem constant byte address 0x4 - core index']
  #allocation1 [shape = 'u32[144,128]{1,0:T(1,128)}', space=vmem, size = 0x12000, scoped, tag = 'internal scratch']
  #allocation2 [shape = 'f32[1]{0:T(128)S(6)}', space=smem, size = 0x200, scoped, tag = 'scoped memory for tpu_custom_call.1']
  %s0 = inlined_call_operand.vmem [shape: f32[27], index: 0, kind: input, shape index: {}]
  %s1 = inlined_call_operand.<no memory space> [shape: f32[1], index: 1, kind: input, shape index: {}]
  %s2 = inlined_call_operand.hbm [shape: f32[8,768], index: 2, kind: input, shape index: {}]
  %s3 = inlined_call_operand.hbm [shape: f32[8,256], index: 3, kind: output, shape index: {}]
  %s4 = sld [smem:[#allocation0]]
  $region30: #{tpu_custom_call.1} parent=0
    _
  %s6 = ssub.s32 1, %s4
  %s7 = scalar_select 0, %s6, %s4
  %8 = sst [smem:[#allocation2]] %s1
  $region1: #{tpu_custom_call.1} parent=0
    #allocation3 [shape = 'u8[512]{0}', space=smem, size = 0x200, scoped, tag = 'input window, operand 0, single buffered']
    #allocation4 [shape = 's32[1]{0}', space=sflag, size = 0x4, scoped, tag = 'scoped memory for tpu_custom_call.1']
    #allocation5 [shape = 's32[1]{0}', space=sflag, size = 0x4, scoped, tag = 'scoped memory for tpu_custom_call.1']
    #allocation6 [shape = 's32[1]{0}', space=sflag, size = 0x4, scoped, tag = 'scoped memory for tpu_custom_call.1']
    #allocation7 [shape = 'u8[24576]{0}', space=vmem, size = 0x6000, scoped, tag = 'input window, operand 2, single buffered']
    #allocation8 [shape = 'u8[8192]{0}', space=vmem, size = 0x2000, scoped, tag = 'output window, operand 0, single buffered']
    %9 = vsyncpa [#allocation6], 0
    %10 = vsyncpa [#allocation4], 0
    %11 = vsyncpa [#allocation5], 0
    // Predicated region
    $region2: #{tpu_custom_call.1} parent=1 // pred_check
      _
    $region3: #{tpu_custom_call.1} parent=1 // pred_check_branch
      %13 = sbr.rel (0) target = $region5
    $region4: #{tpu_custom_call.1} parent=1 // pred_region
      %s15 = ssub.s32 16, 16
      %16 = vsyncadd [#allocation6], %s15
      %s18 = sshll.u32 %s0, 4
      %s19 = int_to_ptr.vmem [resolvable:$true] %s18
      %21 = dma.vmem_to_smem %s19, 16, [#allocation3], [#allocation6]
    $region5: #{tpu_custom_call.1} parent=1 // pred_fallthru
      _
    // Predicated region
    $region6: #{tpu_custom_call.1} parent=1 // pred_check
      _
    $region7: #{tpu_custom_call.1} parent=1 // pred_check_branch
      %23 = sbr.rel (0) target = $region9
    $region8: #{tpu_custom_call.1} parent=1 // pred_region
      _
    $region9: #{tpu_custom_call.1} parent=1 // pred_fallthru
      _
    // Predicated region
    $region10: #{tpu_custom_call.1} parent=1 // pred_check
      _
    $region11: #{tpu_custom_call.1} parent=1 // pred_check_branch
      %25 = sbr.rel (0) target = $region13
    $region12: #{tpu_custom_call.1} parent=1 // pred_region
      %s27 = ssub.s32 768, 768
      %28 = vsyncadd [#allocation4], %s27
      %s30 = sshll.u32 [#allocation7], 4
      %s31 = int_to_ptr.vmem [resolvable:$true] %s30
      %33 = dma.hbm_to_vmem [thread:$0]  %s2, 768, %s31, [#allocation4]
    $region13: #{tpu_custom_call.1} parent=1 // pred_fallthru
      _
    // Predicated region
    $region14: #{tpu_custom_call.1} parent=1 // pred_check
      _
    $region15: #{tpu_custom_call.1} parent=1 // pred_check_branch
      %35 = sbr.rel (0) target = $region17
    $region16: #{tpu_custom_call.1} parent=1 // pred_region
      %36 = dma.done [#allocation6], 16
    $region17: #{tpu_custom_call.1} parent=1 // pred_fallthru
      _
    // Predicated region
    $region18: #{tpu_custom_call.1} parent=1 // pred_check
      _
    $region19: #{tpu_custom_call.1} parent=1 // pred_check_branch
      %38 = sbr.rel (0) target = $region21
    $region20: #{tpu_custom_call.1} parent=1 // pred_region
      %39 = dma.done [#allocation4], 768
    $region21: #{tpu_custom_call.1} parent=1 // pred_fallthru
      _
    %40 = sfence
    %v41 = vld [vmem:[#allocation7] sm:$0xff]
    %v42 = vld [vmem:[#allocation7 + $0x8] sm:$0xff]
    %v43 = vld [vmem:[#allocation7 + $0x10] sm:$0xff]
    %v44 = vld [vmem:[#allocation7 + $0x18] sm:$0xff]
    %v45 = vadd.f32 %v41, %v43
    %v46 = vadd.f32 %v42, %v44
    %v47 = vld [vmem:[#allocation7 + $0x20] sm:$0xff]
    %v48 = vld [vmem:[#allocation7 + $0x28] sm:$0xff]
    %v49 = vadd.f32 %v45, %v47
    %v50 = vadd.f32 %v46, %v48
    %51 = vrot.lane.b32.xlu0 %v49, 112
    %v52 = vpop.permute.xlu0 %51
    %53 = vrot.lane.b32.xlu0 %v50, 112
    %v54 = vpop.permute.xlu0 %53
    %v55 = vlaneseq
    %v56 = vand.u32 %v55, 127
    %vm57 = vcmp.lt.s32.totalorder %v56, 112
    %v58 = vsel %vm57, %v52, %v54
    %v59 = vsel %vm57, %v54, %v52
    %v60 = vadd.f32 %v49, %v58
    %v61 = vadd.f32 %v50, %v59
    %62 = vrot.lane.b32.xlu0 %v49, 96
    %v63 = vpop.permute.xlu0 %62
    %64 = vrot.lane.b32.xlu0 %v50, 96
    %v65 = vpop.permute.xlu0 %64
    %vm66 = vcmp.lt.s32.totalorder %v56, 96
    %v67 = vsel %vm66, %v63, %v65
    %v68 = vsel %vm66, %v65, %v63
    %v69 = vadd.f32 %v60, %v67
    %v70 = vadd.f32 %v61, %v68
    %71 = vrot.lane.b32.xlu0 %v69, 126
    %v72 = vpop.permute.xlu0 %71
    %73 = vrot.lane.b32.xlu0 %v70, 126
    %v74 = vpop.permute.xlu0 %73
    %vm75 = vcmp.lt.s32.totalorder %v56, 126
    %v76 = vsel %vm75, %v72, %v74
    %v77 = vsel %vm75, %v74, %v72
    %v78 = vsub.f32 %v76, %v69
    %v79 = vsub.f32 %v77, %v70
    %s80 = sld [smem:[#allocation2]]
    %v81 = vstv %s80
    %v82 = vadd.f32 %v78, %v81
    %v83 = vadd.f32 %v79, %v81
    %84 = vst [vmem:[#allocation8] sm:$0xff] %v82
    %85 = vst [vmem:[#allocation8 + $0x8] sm:$0xff] %v83
    // Predicated region
    $region22: #{tpu_custom_call.1} parent=1 // pred_check
      _
    $region23: #{tpu_custom_call.1} parent=1 // pred_check_branch
      %87 = sbr.rel (0) target = $region25
    $region24: #{tpu_custom_call.1} parent=1 // pred_region
      %s89 = ssub.s32 256, 256
      %90 = vsyncadd [#allocation5], %s89
      %s92 = sshll.u32 [#allocation8], 4
      %s93 = int_to_ptr.vmem [resolvable:$true] %s92
      %95 = dma.vmem_to_hbm [thread:$0]  %s93, 256, %s3, [#allocation5]
    $region25: #{tpu_custom_call.1} parent=1 // pred_fallthru
      _
    // Predicated region
    $region26: #{tpu_custom_call.1} parent=1 // pred_check
      _
    $region27: #{tpu_custom_call.1} parent=1 // pred_check_branch
      %97 = sbr.rel (0) target = $region29
    $region28: #{tpu_custom_call.1} parent=1 // pred_region
      %98 = dma.done [#allocation5], 256
    $region29: #{tpu_custom_call.1} parent=1 // pred_fallthru
      _
    %99 = vsyncpa [#allocation4], 1
    %100 = vsyncpa [#allocation5], 1
    %101 = vsyncpa [#allocation6], 1

</llo_original>
